<compile_context>
chip_gen: v5e
topology: v5e:2x2
jax: 0.10.0
libtpu: 0.0.40
codegen_flags: <defaults>
</compile_context>

<pallas_src>
import functools

import jax
import jax.numpy as jnp
from jax import lax
from jax.experimental import pallas as pl
from jax.experimental.pallas import tpu as pltpu

EPS = 1e-3
LANE = 128
SUBLANE = 8


def _round_up(x, m):
    return (x + m - 1) // m * m


def mlp_kernel(x_ref, w0_ref, g0_ref, b0_ref, w1_ref, g1_ref, b1_ref,
               wm_ref, bm_ref, o_ref, *, u_real):
    """One batch tile: 2x (matmul -> LayerNorm -> SiLU) -> matmul+bias -> tanh."""
    inv_u = 1.0 / float(u_real)

    def norm_silu(h, g, b):
        # h: (tile_b, U_pad) f32; padded columns are exactly zero, so sums over the
        # padded width equal sums over the real width -> divide by the real U.
        mu = jnp.sum(h, axis=-1, keepdims=True) * inv_u
        var = jnp.sum(h * h, axis=-1, keepdims=True) * inv_u - mu * mu
        hn = (h - mu) * lax.rsqrt(jnp.maximum(var, 0.0) + EPS)
        hn = hn * g + b                      # padded gains/biases are zero -> cols stay 0
        return hn * jax.nn.sigmoid(hn)       # SiLU

    x = x_ref[...]
    h = jnp.dot(x, w0_ref[...], preferred_element_type=jnp.float32)
    h = norm_silu(h, g0_ref[...].astype(jnp.float32), b0_ref[...].astype(jnp.float32))
    h = jnp.dot(h.astype(w1_ref.dtype), w1_ref[...], preferred_element_type=jnp.float32)
    h = norm_silu(h, g1_ref[...].astype(jnp.float32), b1_ref[...].astype(jnp.float32))
    m = jnp.dot(h.astype(wm_ref.dtype), wm_ref[...], preferred_element_type=jnp.float32)
    m = m + bm_ref[...].astype(jnp.float32)
    o_ref[...] = jnp.tanh(m).astype(o_ref.dtype)


def mlp_forward(x, params, *, tile_b=256, min_std=0.1, max_std=1.0, std_param=1.0,
                matmul_dtype=None, vmem_budget_bytes=48 << 20):
    w0, g0, b0, w1, g1, b1, wm, bm = params
    B, D = x.shape
    U = w0.shape[1]
    O = wm.shape[1]
    mm_dtype = x.dtype if matmul_dtype is None else matmul_dtype

    # Pad lane dims to multiples of 128 (lane-dense stores, full MXU/vreg usage).
    D_p = _round_up(D, LANE)
    U_p = _round_up(U, LANE)
    O_p = _round_up(O, LANE)

    # Batch tile: as large as possible (amortize per-step overhead, fill MXU M dim)
    # while the estimated VMEM footprint stays under an explicit budget (v7x: 64 MiB
    # physical, so default budget 48 MiB leaves headroom).
    tile = max(SUBLANE, _round_up(min(tile_b, _round_up(B, SUBLANE)), SUBLANE))

    def footprint(tb):
        io = 2 * 2 * tb * (D_p + O_p)                 # double-buffered x / out tiles
        wts = D_p * U_p + U_p * U_p + U_p * O_p       # single-buffered weights
        vec = 4 * U_p + O_p                           # gains / biases
        act = 3 * tb * U_p                            # f32 intermediates
        return 4 * (io + wts + vec + act)

    while tile > SUBLANE and footprint(tile) > vmem_budget_bytes:
        tile = max(SUBLANE, (tile // 2) // SUBLANE * SUBLANE)

    B_p = _round_up(B, tile)
    grid = (B_p // tile,)
    vmem_limit = int(min(max(32 << 20, 2 * footprint(tile)), 64 << 20))

    pad2 = lambda a, r, c: jnp.pad(a, ((0, r - a.shape[0]), (0, c - a.shape[1])))
    x_p = pad2(x, B_p, D_p).astype(mm_dtype)
    w0_p = pad2(w0, D_p, U_p).astype(mm_dtype)
    w1_p = pad2(w1, U_p, U_p).astype(mm_dtype)
    wm_p = pad2(wm, U_p, O_p).astype(mm_dtype)
    g0_p = pad2(g0, 1, U_p)
    b0_p = pad2(b0, 1, U_p)
    g1_p = pad2(g1, 1, U_p)
    b1_p = pad2(b1, 1, U_p)
    bm_p = pad2(bm, 1, O_p)

    kernel = functools.partial(mlp_kernel, u_real=U)

    def run(single_buffer_weights):
        if single_buffer_weights:
            w_spec = lambda shape: pl.BlockSpec(shape, lambda i: (0, 0),
                                                pipeline_mode=pl.Buffered(1))
        else:
            w_spec = lambda shape: pl.BlockSpec(shape, lambda i: (0, 0))
        return pl.pallas_call(
            kernel,
            out_shape=jax.ShapeDtypeStruct((B_p, O_p), x.dtype),
            grid_spec=pltpu.PrefetchScalarGridSpec(
                num_scalar_prefetch=0,
                grid=grid,
                in_specs=[
                    pl.BlockSpec((tile, D_p), lambda i: (i, 0)),
                    w_spec((D_p, U_p)), w_spec((1, U_p)), w_spec((1, U_p)),
                    w_spec((U_p, U_p)), w_spec((1, U_p)), w_spec((1, U_p)),
                    w_spec((U_p, O_p)), w_spec((1, O_p)),
                ],
                out_specs=pl.BlockSpec((tile, O_p), lambda i: (i, 0)),
            ),
            compiler_params=pltpu.CompilerParams(
                dimension_semantics=("parallel",),
                vmem_limit_bytes=vmem_limit),
        )(x_p, w0_p, g0_p, b0_p, w1_p, g1_p, b1_p, wm_p, bm_p)

    try:
        mean_p = run(single_buffer_weights=True)
    except Exception:
        # Fallback if this JAX build rejects single-buffered pipeline_mode.
        mean_p = run(single_buffer_weights=False)

    mean_tanh = mean_p[:B, :O]
    # dist='normal' with fixed (non-learned) std: scalar glue, not a hot path.
    std = (max_std - min_std) * jax.nn.sigmoid(std_param + 2.0) + min_std
    return mean_tanh, jnp.asarray(std, dtype=x.dtype)


def init_params(key, inp_dim, units, out_dim, dtype=jnp.float32):
    ks = jax.random.split(key, 4)
    # nn.Linear weights are (out,in); store pre-transposed as (in,out).
    w0 = jax.random.normal(ks[0], (inp_dim, units), dtype) * 0.1
    w1 = jax.random.normal(ks[1], (units, units), dtype) * 0.1
    wm = jax.random.normal(ks[2], (units, out_dim), dtype) * 0.1
    bm = jax.random.normal(ks[3], (1, out_dim), dtype) * 0.01
    g0 = jnp.ones((1, units), dtype)
    b0 = jnp.zeros((1, units), dtype)
    g1 = jnp.ones((1, units), dtype)
    b1 = jnp.zeros((1, units), dtype)
    return (w0, g0, b0, w1, g1, b1, wm, bm)


def reference_forward(x, params, *, min_std=0.1, max_std=1.0, std_param=1.0):
    w0, g0, b0, w1, g1, b1, wm, bm = params

    def layer(h, w, g, b):
        h = h @ w
        mu = h.mean(-1, keepdims=True)
        var = ((h - mu) ** 2).mean(-1, keepdims=True)
        h = (h - mu) / jnp.sqrt(var + EPS) * g + b
        return h * jax.nn.sigmoid(h)

    h = layer(x, w0, g0, b0)
    h = layer(h, w1, g1, b1)
    m = h @ wm + bm
    std = (max_std - min_std) * jax.nn.sigmoid(std_param + 2.0) + min_std
    return jnp.tanh(m), std


if __name__ == "__main__":
    B, INP, UNITS, OUT = 16, 32, 32, 8   # layers=2, shape=8 (small demo shapes)
    key = jax.random.PRNGKey(0)
    kx, kp = jax.random.split(key)
    x = jax.random.normal(kx, (B, INP), jnp.float32)
    params = init_params(kp, INP, UNITS, OUT)

    # f32 path (matches the f32 reference tightly).
    mean, std = mlp_forward(x, params)
    mean = jax.block_until_ready(mean)
    std = jax.block_until_ready(std)

    ref_mean, ref_std = reference_forward(x, params)
    assert mean.shape == ref_mean.shape
    assert jnp.allclose(mean, ref_mean, atol=1e-5, rtol=1e-5)
    assert jnp.allclose(std, ref_std, atol=1e-6)

    # bf16 matmul path (v6e/v7x fast path); LayerNorm stats stay f32 in-kernel.
    mean_bf16, _ = mlp_forward(x, params, matmul_dtype=jnp.bfloat16)
    mean_bf16 = jax.block_until_ready(mean_bf16)
    assert jnp.allclose(mean_bf16.astype(jnp.float32), ref_mean, atol=1e-1, rtol=1e-1)

    # TODO(synk): the torch distribution object (ContDist/Independent Normal) has no
    # Pallas equivalent; we return its parameters (tanh(mean), std) instead.
    print("KERNEL_OK")
</pallas_src>

<mosaic_0001>
module attributes {stable_mosaic.version = 11 : i64} {
  func.func @mlp_kernel(%arg0: i32, %arg1: memref<16x128xf32, #tpu.memory_space<vmem>>, %arg2: memref<128x128xf32, #tpu.memory_space<vmem>>, %arg3: memref<1x128xf32, #tpu.memory_space<vmem>>, %arg4: memref<1x128xf32, #tpu.memory_space<vmem>>, %arg5: memref<128x128xf32, #tpu.memory_space<vmem>>, %arg6: memref<1x128xf32, #tpu.memory_space<vmem>>, %arg7: memref<1x128xf32, #tpu.memory_space<vmem>>, %arg8: memref<128x128xf32, #tpu.memory_space<vmem>>, %arg9: memref<1x128xf32, #tpu.memory_space<vmem>>, %arg10: memref<16x128xf32, #tpu.memory_space<vmem>>) attributes {dimension_semantics = [#tpu.dimension_semantics<parallel>], iteration_bounds = array<i64: 1>, scalar_prefetch = 0 : i64, scratch_operands = 0 : i64, tpu.core_type = #tpu.core_type<tc>, window_params = [{transform_indices = @transform_0, window_bounds = array<i64: 16, 128>}, {pipeline_mode = #tpu.pipeline_mode<synchronous>, transform_indices = @transform_1, window_bounds = array<i64: 128, 128>}, {pipeline_mode = #tpu.pipeline_mode<synchronous>, transform_indices = @transform_2, window_bounds = array<i64: 1, 128>}, {pipeline_mode = #tpu.pipeline_mode<synchronous>, transform_indices = @transform_3, window_bounds = array<i64: 1, 128>}, {pipeline_mode = #tpu.pipeline_mode<synchronous>, transform_indices = @transform_4, window_bounds = array<i64: 128, 128>}, {pipeline_mode = #tpu.pipeline_mode<synchronous>, transform_indices = @transform_5, window_bounds = array<i64: 1, 128>}, {pipeline_mode = #tpu.pipeline_mode<synchronous>, transform_indices = @transform_6, window_bounds = array<i64: 1, 128>}, {pipeline_mode = #tpu.pipeline_mode<synchronous>, transform_indices = @transform_7, window_bounds = array<i64: 128, 128>}, {pipeline_mode = #tpu.pipeline_mode<synchronous>, transform_indices = @transform_8, window_bounds = array<i64: 1, 128>}, {transform_indices = @transform_9, window_bounds = array<i64: 16, 128>}]} {
    %c0 = arith.constant 0 : index
    %c0_0 = arith.constant 0 : index
    %0 = vector.load %arg1[%c0, %c0_0] : memref<16x128xf32, #tpu.memory_space<vmem>>, vector<16x128xf32>
    %c0_1 = arith.constant 0 : index
    %c0_2 = arith.constant 0 : index
    %1 = vector.load %arg2[%c0_1, %c0_2] : memref<128x128xf32, #tpu.memory_space<vmem>>, vector<128x128xf32>
    %cst = arith.constant dense<0.000000e+00> : vector<16x128xf32>
    %2 = tpu.matmul %0, %1, %cst {dimension_numbers = #tpu.dot_dimension_numbers<[1], [0], [0], [1], [0, 0, 1, 1], [], []>} : vector<16x128xf32>, vector<128x128xf32>, vector<16x128xf32> -> vector<16x128xf32>
    %c0_3 = arith.constant 0 : index
    %c0_4 = arith.constant 0 : index
    %3 = vector.load %arg3[%c0_3, %c0_4] : memref<1x128xf32, #tpu.memory_space<vmem>>, vector<1x128xf32>
    %c0_5 = arith.constant 0 : index
    %c0_6 = arith.constant 0 : index
    %4 = vector.load %arg4[%c0_5, %c0_6] : memref<1x128xf32, #tpu.memory_space<vmem>>, vector<1x128xf32>
    %cst_7 = arith.constant dense<0.000000e+00> : vector<16xf32>
    %5 = vector.multi_reduction <add>, %2, %cst_7 [1] : vector<16x128xf32> to vector<16xf32>
    %6 = vector.shape_cast %5 : vector<16xf32> to vector<16x1xf32>
    %cst_8 = arith.constant 3.125000e-02 : f32
    %7 = vector.broadcast %cst_8 : f32 to vector<16x1xf32>
    %8 = arith.mulf %6, %7 : vector<16x1xf32>
    %9 = arith.mulf %2, %2 : vector<16x128xf32>
    %cst_9 = arith.constant dense<0.000000e+00> : vector<16xf32>
    %10 = vector.multi_reduction <add>, %9, %cst_9 [1] : vector<16x128xf32> to vector<16xf32>
    %11 = vector.shape_cast %10 : vector<16xf32> to vector<16x1xf32>
    %cst_10 = arith.constant 3.125000e-02 : f32
    %12 = vector.broadcast %cst_10 : f32 to vector<16x1xf32>
    %13 = arith.mulf %11, %12 : vector<16x1xf32>
    %14 = arith.mulf %8, %8 : vector<16x1xf32>
    %15 = arith.subf %13, %14 : vector<16x1xf32>
    %16 = vector.broadcast %8 : vector<16x1xf32> to vector<16x128xf32>
    %17 = arith.subf %2, %16 : vector<16x128xf32>
    %cst_11 = arith.constant 0.000000e+00 : f32
    %18 = vector.broadcast %cst_11 : f32 to vector<16x1xf32>
    %19 = arith.maximumf %15, %18 : vector<16x1xf32>
    %cst_12 = arith.constant 1.000000e-03 : f32
    %20 = vector.broadcast %cst_12 : f32 to vector<16x1xf32>
    %21 = arith.addf %19, %20 : vector<16x1xf32>
    %22 = math.rsqrt %21 : vector<16x1xf32>
    %23 = vector.broadcast %22 : vector<16x1xf32> to vector<16x128xf32>
    %24 = arith.mulf %17, %23 : vector<16x128xf32>
    %25 = vector.broadcast %3 : vector<1x128xf32> to vector<16x128xf32>
    %26 = arith.mulf %24, %25 : vector<16x128xf32>
    %27 = vector.broadcast %4 : vector<1x128xf32> to vector<16x128xf32>
    %28 = arith.addf %26, %27 : vector<16x128xf32>
    %29 = arith.negf %28 : vector<16x128xf32>
    %30 = math.exp %29 : vector<16x128xf32>
    %cst_13 = arith.constant 1.000000e+00 : f32
    %31 = vector.broadcast %cst_13 : f32 to vector<16x128xf32>
    %32 = arith.addf %31, %30 : vector<16x128xf32>
    %33 = arith.divf %31, %32 : vector<16x128xf32>
    %34 = arith.mulf %28, %33 : vector<16x128xf32>
    %c0_14 = arith.constant 0 : index
    %c0_15 = arith.constant 0 : index
    %35 = vector.load %arg5[%c0_14, %c0_15] : memref<128x128xf32, #tpu.memory_space<vmem>>, vector<128x128xf32>
    %cst_16 = arith.constant dense<0.000000e+00> : vector<16x128xf32>
    %36 = tpu.matmul %34, %35, %cst_16 {dimension_numbers = #tpu.dot_dimension_numbers<[1], [0], [0], [1], [0, 0, 1, 1], [], []>} : vector<16x128xf32>, vector<128x128xf32>, vector<16x128xf32> -> vector<16x128xf32>
    %c0_17 = arith.constant 0 : index
    %c0_18 = arith.constant 0 : index
    %37 = vector.load %arg6[%c0_17, %c0_18] : memref<1x128xf32, #tpu.memory_space<vmem>>, vector<1x128xf32>
    %c0_19 = arith.constant 0 : index
    %c0_20 = arith.constant 0 : index
    %38 = vector.load %arg7[%c0_19, %c0_20] : memref<1x128xf32, #tpu.memory_space<vmem>>, vector<1x128xf32>
    %cst_21 = arith.constant dense<0.000000e+00> : vector<16xf32>
    %39 = vector.multi_reduction <add>, %36, %cst_21 [1] : vector<16x128xf32> to vector<16xf32>
    %40 = vector.shape_cast %39 : vector<16xf32> to vector<16x1xf32>
    %cst_22 = arith.constant 3.125000e-02 : f32
    %41 = vector.broadcast %cst_22 : f32 to vector<16x1xf32>
    %42 = arith.mulf %40, %41 : vector<16x1xf32>
    %43 = arith.mulf %36, %36 : vector<16x128xf32>
    %cst_23 = arith.constant dense<0.000000e+00> : vector<16xf32>
    %44 = vector.multi_reduction <add>, %43, %cst_23 [1] : vector<16x128xf32> to vector<16xf32>
    %45 = vector.shape_cast %44 : vector<16xf32> to vector<16x1xf32>
    %cst_24 = arith.constant 3.125000e-02 : f32
    %46 = vector.broadcast %cst_24 : f32 to vector<16x1xf32>
    %47 = arith.mulf %45, %46 : vector<16x1xf32>
    %48 = arith.mulf %42, %42 : vector<16x1xf32>
    %49 = arith.subf %47, %48 : vector<16x1xf32>
    %50 = vector.broadcast %42 : vector<16x1xf32> to vector<16x128xf32>
    %51 = arith.subf %36, %50 : vector<16x128xf32>
    %cst_25 = arith.constant 0.000000e+00 : f32
    %52 = vector.broadcast %cst_25 : f32 to vector<16x1xf32>
    %53 = arith.maximumf %49, %52 : vector<16x1xf32>
    %cst_26 = arith.constant 1.000000e-03 : f32
    %54 = vector.broadcast %cst_26 : f32 to vector<16x1xf32>
    %55 = arith.addf %53, %54 : vector<16x1xf32>
    %56 = math.rsqrt %55 : vector<16x1xf32>
    %57 = vector.broadcast %56 : vector<16x1xf32> to vector<16x128xf32>
    %58 = arith.mulf %51, %57 : vector<16x128xf32>
    %59 = vector.broadcast %37 : vector<1x128xf32> to vector<16x128xf32>
    %60 = arith.mulf %58, %59 : vector<16x128xf32>
    %61 = vector.broadcast %38 : vector<1x128xf32> to vector<16x128xf32>
    %62 = arith.addf %60, %61 : vector<16x128xf32>
    %63 = arith.negf %62 : vector<16x128xf32>
    %64 = math.exp %63 : vector<16x128xf32>
    %cst_27 = arith.constant 1.000000e+00 : f32
    %65 = vector.broadcast %cst_27 : f32 to vector<16x128xf32>
    %66 = arith.addf %65, %64 : vector<16x128xf32>
    %67 = arith.divf %65, %66 : vector<16x128xf32>
    %68 = arith.mulf %62, %67 : vector<16x128xf32>
    %c0_28 = arith.constant 0 : index
    %c0_29 = arith.constant 0 : index
    %69 = vector.load %arg8[%c0_28, %c0_29] : memref<128x128xf32, #tpu.memory_space<vmem>>, vector<128x128xf32>
    %cst_30 = arith.constant dense<0.000000e+00> : vector<16x128xf32>
    %70 = tpu.matmul %68, %69, %cst_30 {dimension_numbers = #tpu.dot_dimension_numbers<[1], [0], [0], [1], [0, 0, 1, 1], [], []>} : vector<16x128xf32>, vector<128x128xf32>, vector<16x128xf32> -> vector<16x128xf32>
    %c0_31 = arith.constant 0 : index
    %c0_32 = arith.constant 0 : index
    %71 = vector.load %arg9[%c0_31, %c0_32] : memref<1x128xf32, #tpu.memory_space<vmem>>, vector<1x128xf32>
    %72 = vector.broadcast %71 : vector<1x128xf32> to vector<16x128xf32>
    %73 = arith.addf %70, %72 : vector<16x128xf32>
    %74 = math.tanh %73 : vector<16x128xf32>
    %c0_33 = arith.constant 0 : index
    %c0_34 = arith.constant 0 : index
    %75 = vector.load %arg10[%c0_33, %c0_34] : memref<16x128xf32, #tpu.memory_space<vmem>>, vector<16x128xf32>
    tpu.vector_store %arg10[%c0_33, %c0_34], %74 {strides = array<i32>} : memref<16x128xf32, #tpu.memory_space<vmem>>, vector<16x128xf32>,
    return
  }
  func.func @transform_0(%arg0: i32) -> (i32, i32) {
    %c0_i32 = arith.constant 0 : i32
    %c0_i32_0 = arith.constant 0 : i32
    return %arg0, %c0_i32 : i32, i32
  }
  func.func @transform_1(%arg0: i32) -> (i32, i32) {
    %c0_i32 = arith.constant 0 : i32
    %c0_i32_0 = arith.constant 0 : i32
    %c0_i32_1 = arith.constant 0 : i32
    return %c0_i32, %c0_i32_0 : i32, i32
  }
  func.func @transform_2(%arg0: i32) -> (i32, i32) {
    %c0_i32 = arith.constant 0 : i32
    %c0_i32_0 = arith.constant 0 : i32
    %c0_i32_1 = arith.constant 0 : i32
    return %c0_i32, %c0_i32_0 : i32, i32
  }
  func.func @transform_3(%arg0: i32) -> (i32, i32) {
    %c0_i32 = arith.constant 0 : i32
    %c0_i32_0 = arith.constant 0 : i32
    %c0_i32_1 = arith.constant 0 : i32
    return %c0_i32, %c0_i32_0 : i32, i32
  }
  func.func @transform_4(%arg0: i32) -> (i32, i32) {
    %c0_i32 = arith.constant 0 : i32
    %c0_i32_0 = arith.constant 0 : i32
    %c0_i32_1 = arith.constant 0 : i32
    return %c0_i32, %c0_i32_0 : i32, i32
  }
  func.func @transform_5(%arg0: i32) -> (i32, i32) {
    %c0_i32 = arith.constant 0 : i32
    %c0_i32_0 = arith.constant 0 : i32
    %c0_i32_1 = arith.constant 0 : i32
    return %c0_i32, %c0_i32_0 : i32, i32
  }
  func.func @transform_6(%arg0: i32) -> (i32, i32) {
    %c0_i32 = arith.constant 0 : i32
    %c0_i32_0 = arith.constant 0 : i32
    %c0_i32_1 = arith.constant 0 : i32
    return %c0_i32, %c0_i32_0 : i32, i32
  }
  func.func @transform_7(%arg0: i32) -> (i32, i32) {
    %c0_i32 = arith.constant 0 : i32
    %c0_i32_0 = arith.constant 0 : i32
    %c0_i32_1 = arith.constant 0 : i32
    return %c0_i32, %c0_i32_0 : i32, i32
  }
  func.func @transform_8(%arg0: i32) -> (i32, i32) {
    %c0_i32 = arith.constant 0 : i32
    %c0_i32_0 = arith.constant 0 : i32
    %c0_i32_1 = arith.constant 0 : i32
    return %c0_i32, %c0_i32_0 : i32, i32
  }
  func.func @transform_9(%arg0: i32) -> (i32, i32) {
    %c0_i32 = arith.constant 0 : i32
    %c0_i32_0 = arith.constant 0 : i32
    return %arg0, %c0_i32 : i32, i32
  }
}

module attributes {stable_mosaic.version = 11 : i64} {
  func.func @mlp_kernel(%arg0: i32, %arg1: memref<16x128xf32, #tpu.memory_space<vmem>>, %arg2: memref<128x128xf32, #tpu.memory_space<vmem>>, %arg3: memref<1x128xf32, #tpu.memory_space<vmem>>, %arg4: memref<1x128xf32, #tpu.memory_space<vmem>>, %arg5: memref<128x128xf32, #tpu.memory_space<vmem>>, %arg6: memref<1x128xf32, #tpu.memory_space<vmem>>, %arg7: memref<1x128xf32, #tpu.memory_space<vmem>>, %arg8: memref<128x128xf32, #tpu.memory_space<vmem>>, %arg9: memref<1x128xf32, #tpu.memory_space<vmem>>, %arg10: memref<16x128xf32, #tpu.memory_space<vmem>>) attributes {dimension_semantics = [#tpu.dimension_semantics<parallel>], iteration_bounds = array<i64: 1>, scalar_prefetch = 0 : i64, scratch_operands = 0 : i64, tpu.core_type = #tpu.core_type<tc>, window_params = [{transform_indices = @transform_0, window_bounds = array<i64: 16, 128>}, {pipeline_mode = #tpu.pipeline_mode<synchronous>, transform_indices = @transform_1, window_bounds = array<i64: 128, 128>}, {pipeline_mode = #tpu.pipeline_mode<synchronous>, transform_indices = @transform_2, window_bounds = array<i64: 1, 128>}, {pipeline_mode = #tpu.pipeline_mode<synchronous>, transform_indices = @transform_3, window_bounds = array<i64: 1, 128>}, {pipeline_mode = #tpu.pipeline_mode<synchronous>, transform_indices = @transform_4, window_bounds = array<i64: 128, 128>}, {pipeline_mode = #tpu.pipeline_mode<synchronous>, transform_indices = @transform_5, window_bounds = array<i64: 1, 128>}, {pipeline_mode = #tpu.pipeline_mode<synchronous>, transform_indices = @transform_6, window_bounds = array<i64: 1, 128>}, {pipeline_mode = #tpu.pipeline_mode<synchronous>, transform_indices = @transform_7, window_bounds = array<i64: 128, 128>}, {pipeline_mode = #tpu.pipeline_mode<synchronous>, transform_indices = @transform_8, window_bounds = array<i64: 1, 128>}, {transform_indices = @transform_9, window_bounds = array<i64: 16, 128>}]} {
    %c0 = arith.constant 0 : index
    %c0_0 = arith.constant 0 : index
    %0 = vector.load %arg1[%c0, %c0_0] : memref<16x128xf32, #tpu.memory_space<vmem>>, vector<16x128xf32>
    %c0_1 = arith.constant 0 : index
    %c0_2 = arith.constant 0 : index
    %1 = vector.load %arg2[%c0_1, %c0_2] : memref<128x128xf32, #tpu.memory_space<vmem>>, vector<128x128xf32>
    %cst = arith.constant dense<0.000000e+00> : vector<16x128xf32>
    %2 = tpu.matmul %0, %1, %cst {dimension_numbers = #tpu.dot_dimension_numbers<[1], [0], [0], [1], [0, 0, 1, 1], [], []>} : vector<16x128xf32>, vector<128x128xf32>, vector<16x128xf32> -> vector<16x128xf32>
    %c0_3 = arith.constant 0 : index
    %c0_4 = arith.constant 0 : index
    %3 = vector.load %arg3[%c0_3, %c0_4] : memref<1x128xf32, #tpu.memory_space<vmem>>, vector<1x128xf32>
    %c0_5 = arith.constant 0 : index
    %c0_6 = arith.constant 0 : index
    %4 = vector.load %arg4[%c0_5, %c0_6] : memref<1x128xf32, #tpu.memory_space<vmem>>, vector<1x128xf32>
    %cst_7 = arith.constant dense<0.000000e+00> : vector<16xf32>
    %5 = vector.multi_reduction <add>, %2, %cst_7 [1] : vector<16x128xf32> to vector<16xf32>
    %6 = vector.shape_cast %5 : vector<16xf32> to vector<16x1xf32>
    %cst_8 = arith.constant 3.125000e-02 : f32
    %7 = vector.broadcast %cst_8 : f32 to vector<16x1xf32>
    %8 = arith.mulf %6, %7 : vector<16x1xf32>
    %9 = arith.mulf %2, %2 : vector<16x128xf32>
    %cst_9 = arith.constant dense<0.000000e+00> : vector<16xf32>
    %10 = vector.multi_reduction <add>, %9, %cst_9 [1] : vector<16x128xf32> to vector<16xf32>
    %11 = vector.shape_cast %10 : vector<16xf32> to vector<16x1xf32>
    %cst_10 = arith.constant 3.125000e-02 : f32
    %12 = vector.broadcast %cst_10 : f32 to vector<16x1xf32>
    %13 = arith.mulf %11, %12 : vector<16x1xf32>
    %14 = arith.mulf %8, %8 : vector<16x1xf32>
    %15 = arith.subf %13, %14 : vector<16x1xf32>
    %16 = vector.broadcast %8 : vector<16x1xf32> to vector<16x128xf32>
    %17 = arith.subf %2, %16 : vector<16x128xf32>
    %cst_11 = arith.constant 0.000000e+00 : f32
    %18 = vector.broadcast %cst_11 : f32 to vector<16x1xf32>
    %19 = arith.maximumf %15, %18 : vector<16x1xf32>
    %cst_12 = arith.constant 1.000000e-03 : f32
    %20 = vector.broadcast %cst_12 : f32 to vector<16x1xf32>
    %21 = arith.addf %19, %20 : vector<16x1xf32>
    %22 = math.rsqrt %21 : vector<16x1xf32>
    %23 = vector.broadcast %22 : vector<16x1xf32> to vector<16x128xf32>
    %24 = arith.mulf %17, %23 : vector<16x128xf32>
    %25 = vector.broadcast %3 : vector<1x128xf32> to vector<16x128xf32>
    %26 = arith.mulf %24, %25 : vector<16x128xf32>
    %27 = vector.broadcast %4 : vector<1x128xf32> to vector<16x128xf32>
    %28 = arith.addf %26, %27 : vector<16x128xf32>
    %29 = arith.negf %28 : vector<16x128xf32>
    %30 = math.exp %29 : vector<16x128xf32>
    %cst_13 = arith.constant 1.000000e+00 : f32
    %31 = vector.broadcast %cst_13 : f32 to vector<16x128xf32>
    %32 = arith.addf %31, %30 : vector<16x128xf32>
    %33 = arith.divf %31, %32 : vector<16x128xf32>
    %34 = arith.mulf %28, %33 : vector<16x128xf32>
    %c0_14 = arith.constant 0 : index
    %c0_15 = arith.constant 0 : index
    %35 = vector.load %arg5[%c0_14, %c0_15] : memref<128x128xf32, #tpu.memory_space<vmem>>, vector<128x128xf32>
    %cst_16 = arith.constant dense<0.000000e+00> : vector<16x128xf32>
    %36 = tpu.matmul %34, %35, %cst_16 {dimension_numbers = #tpu.dot_dimension_numbers<[1], [0], [0], [1], [0, 0, 1, 1], [], []>} : vector<16x128xf32>, vector<128x128xf32>, vector<16x128xf32> -> vector<16x128xf32>
    %c0_17 = arith.constant 0 : index
    %c0_18 = arith.constant 0 : index
    %37 = vector.load %arg6[%c0_17, %c0_18] : memref<1x128xf32, #tpu.memory_space<vmem>>, vector<1x128xf32>
    %c0_19 = arith.constant 0 : index
    %c0_20 = arith.constant 0 : index
    %38 = vector.load %arg7[%c0_19, %c0_20] : memref<1x128xf32, #tpu.memory_space<vmem>>, vector<1x128xf32>
    %cst_21 = arith.constant dense<0.000000e+00> : vector<16xf32>
    %39 = vector.multi_reduction <add>, %36, %cst_21 [1] : vector<16x128xf32> to vector<16xf32>
    %40 = vector.shape_cast %39 : vector<16xf32> to vector<16x1xf32>
    %cst_22 = arith.constant 3.125000e-02 : f32
    %41 = vector.broadcast %cst_22 : f32 to vector<16x1xf32>
    %42 = arith.mulf %40, %41 : vector<16x1xf32>
    %43 = arith.mulf %36, %36 : vector<16x128xf32>
    %cst_23 = arith.constant dense<0.000000e+00> : vector<16xf32>
    %44 = vector.multi_reduction <add>, %43, %cst_23 [1] : vector<16x128xf32> to vector<16xf32>
    %45 = vector.shape_cast %44 : vector<16xf32> to vector<16x1xf32>
    %cst_24 = arith.constant 3.125000e-02 : f32
    %46 = vector.broadcast %cst_24 : f32 to vector<16x1xf32>
    %47 = arith.mulf %45, %46 : vector<16x1xf32>
    %48 = arith.mulf %42, %42 : vector<16x1xf32>
    %49 = arith.subf %47, %48 : vector<16x1xf32>
    %50 = vector.broadcast %42 : vector<16x1xf32> to vector<16x128xf32>
    %51 = arith.subf %36, %50 : vector<16x128xf32>
    %cst_25 = arith.constant 0.000000e+00 : f32
    %52 = vector.broadcast %cst_25 : f32 to vector<16x1xf32>
    %53 = arith.maximumf %49, %52 : vector<16x1xf32>
    %cst_26 = arith.constant 1.000000e-03 : f32
    %54 = vector.broadcast %cst_26 : f32 to vector<16x1xf32>
    %55 = arith.addf %53, %54 : vector<16x1xf32>
    %56 = math.rsqrt %55 : vector<16x1xf32>
    %57 = vector.broadcast %56 : vector<16x1xf32> to vector<16x128xf32>
    %58 = arith.mulf %51, %57 : vector<16x128xf32>
    %59 = vector.broadcast %37 : vector<1x128xf32> to vector<16x128xf32>
    %60 = arith.mulf %58, %59 : vector<16x128xf32>
    %61 = vector.broadcast %38 : vector<1x128xf32> to vector<16x128xf32>
    %62 = arith.addf %60, %61 : vector<16x128xf32>
    %63 = arith.negf %62 : vector<16x128xf32>
    %64 = math.exp %63 : vector<16x128xf32>
    %cst_27 = arith.constant 1.000000e+00 : f32
    %65 = vector.broadcast %cst_27 : f32 to vector<16x128xf32>
    %66 = arith.addf %65, %64 : vector<16x128xf32>
    %67 = arith.divf %65, %66 : vector<16x128xf32>
    %68 = arith.mulf %62, %67 : vector<16x128xf32>
    %c0_28 = arith.constant 0 : index
    %c0_29 = arith.constant 0 : index
    %69 = vector.load %arg8[%c0_28, %c0_29] : memref<128x128xf32, #tpu.memory_space<vmem>>, vector<128x128xf32>
    %cst_30 = arith.constant dense<0.000000e+00> : vector<16x128xf32>
    %70 = tpu.matmul %68, %69, %cst_30 {dimension_numbers = #tpu.dot_dimension_numbers<[1], [0], [0], [1], [0, 0, 1, 1], [], []>} : vector<16x128xf32>, vector<128x128xf32>, vector<16x128xf32> -> vector<16x128xf32>
    %c0_31 = arith.constant 0 : index
    %c0_32 = arith.constant 0 : index
    %71 = vector.load %arg9[%c0_31, %c0_32] : memref<1x128xf32, #tpu.memory_space<vmem>>, vector<1x128xf32>
    %72 = vector.broadcast %71 : vector<1x128xf32> to vector<16x128xf32>
    %73 = arith.addf %70, %72 : vector<16x128xf32>
    %74 = math.tanh %73 : vector<16x128xf32>
    %c0_33 = arith.constant 0 : index
    %c0_34 = arith.constant 0 : index
    %75 = vector.load %arg10[%c0_33, %c0_34] : memref<16x128xf32, #tpu.memory_space<vmem>>, vector<16x128xf32>
    tpu.vector_store %arg10[%c0_33, %c0_34], %74 {strides = array<i32>} : memref<16x128xf32, #tpu.memory_space<vmem>>, vector<16x128xf32>,
    return
  }
  func.func @transform_0(%arg0: i32) -> (i32, i32) {
    %c0_i32 = arith.constant 0 : i32
    %c0_i32_0 = arith.constant 0 : i32
    return %arg0, %c0_i32 : i32, i32
  }
  func.func @transform_1(%arg0: i32) -> (i32, i32) {
    %c0_i32 = arith.constant 0 : i32
    %c0_i32_0 = arith.constant 0 : i32
    %c0_i32_1 = arith.constant 0 : i32
    return %c0_i32, %c0_i32_0 : i32, i32
  }
  func.func @transform_2(%arg0: i32) -> (i32, i32) {
    %c0_i32 = arith.constant 0 : i32
    %c0_i32_0 = arith.constant 0 : i32
    %c0_i32_1 = arith.constant 0 : i32
    return %c0_i32, %c0_i32_0 : i32, i32
  }
  func.func @transform_3(%arg0: i32) -> (i32, i32) {
    %c0_i32 = arith.constant 0 : i32
    %c0_i32_0 = arith.constant 0 : i32
    %c0_i32_1 = arith.constant 0 : i32
    return %c0_i32, %c0_i32_0 : i32, i32
  }
  func.func @transform_4(%arg0: i32) -> (i32, i32) {
    %c0_i32 = arith.constant 0 : i32
    %c0_i32_0 = arith.constant 0 : i32
    %c0_i32_1 = arith.constant 0 : i32
    return %c0_i32, %c0_i32_0 : i32, i32
  }
  func.func @transform_5(%arg0: i32) -> (i32, i32) {
    %c0_i32 = arith.constant 0 : i32
    %c0_i32_0 = arith.constant 0 : i32
    %c0_i32_1 = arith.constant 0 : i32
    return %c0_i32, %c0_i32_0 : i32, i32
  }
  func.func @transform_6(%arg0: i32) -> (i32, i32) {
    %c0_i32 = arith.constant 0 : i32
    %c0_i32_0 = arith.constant 0 : i32
    %c0_i32_1 = arith.constant 0 : i32
    return %c0_i32, %c0_i32_0 : i32, i32
  }
  func.func @transform_7(%arg0: i32) -> (i32, i32) {
    %c0_i32 = arith.constant 0 : i32
    %c0_i32_0 = arith.constant 0 : i32
    %c0_i32_1 = arith.constant 0 : i32
    return %c0_i32, %c0_i32_0 : i32, i32
  }
  func.func @transform_8(%arg0: i32) -> (i32, i32) {
    %c0_i32 = arith.constant 0 : i32
    %c0_i32_0 = arith.constant 0 : i32
    %c0_i32_1 = arith.constant 0 : i32
    return %c0_i32, %c0_i32_0 : i32, i32
  }
  func.func @transform_9(%arg0: i32) -> (i32, i32) {
    %c0_i32 = arith.constant 0 : i32
    %c0_i32_0 = arith.constant 0 : i32
    return %arg0, %c0_i32 : i32, i32
  }
}

</mosaic_0001>

<llo_original>
// kernel: tpu_custom_call.1
$region0: #{tpu_custom_call.1}
  #allocation0 [shape = 'u32[]', space=smem, size = 0x4, offset = 0x4, fixed_abs, tag = 'smem constant byte address 0x4 - core index']
  #allocation1 [shape = 'u32[72,128]{1,0:T(1,128)}', space=vmem, size = 0x9000, scoped, tag = 'internal scratch']
  %s0 = inlined_call_operand.hbm [shape: f32[16,128], index: 0, kind: input, shape index: {}]
  %s1 = inlined_call_operand.hbm [shape: f32[128,128], index: 1, kind: input, shape index: {}]
  %s2 = inlined_call_operand.vmem [shape: f32[1,128], index: 2, kind: input, shape index: {}]
  %s3 = inlined_call_operand.vmem [shape: f32[1,128], index: 3, kind: input, shape index: {}]
  %s4 = inlined_call_operand.hbm [shape: f32[128,128], index: 4, kind: input, shape index: {}]
  %s5 = inlined_call_operand.vmem [shape: f32[1,128], index: 5, kind: input, shape index: {}]
  %s6 = inlined_call_operand.vmem [shape: f32[1,128], index: 6, kind: input, shape index: {}]
  %s7 = inlined_call_operand.hbm [shape: f32[128,128], index: 7, kind: input, shape index: {}]
  %s8 = inlined_call_operand.vmem [shape: f32[1,128], index: 8, kind: input, shape index: {}]
  %s9 = inlined_call_operand.hbm [shape: f32[16,128], index: 9, kind: output, shape index: {}]
  %s10 = sld [smem:[#allocation0]]
  $region62: #{tpu_custom_call.1} parent=0
    _
  %s12 = ssub.s32 1, %s10
  %s13 = scalar_select 0, %s12, %s10
  $region1: #{tpu_custom_call.1} parent=0
    #allocation2 [shape = 'u8[8192]{0}', space=vmem, size = 0x2000, scoped, tag = 'input window, operand 0, single buffered']
    #allocation3 [shape = 's32[1]{0}', space=sflag, size = 0x4, scoped, tag = 'scoped memory for tpu_custom_call.1']
    #allocation4 [shape = 's32[1]{0}', space=sflag, size = 0x4, scoped, tag = 'scoped memory for tpu_custom_call.1']
    #allocation5 [shape = 'u8[65536]{0}', space=vmem, size = 0x10000, scoped, tag = 'input window, operand 1, single buffered']
    #allocation6 [shape = 's32[1]{0}', space=sflag, size = 0x4, scoped, tag = 'scoped memory for tpu_custom_call.1']
    #allocation7 [shape = 'u8[65536]{0}', space=vmem, size = 0x10000, scoped, tag = 'input window, operand 4, single buffered']
    #allocation8 [shape = 'u8[65536]{0}', space=vmem, size = 0x10000, scoped, tag = 'input window, operand 7, single buffered']
    #allocation9 [shape = 's32[1]{0}', space=sflag, size = 0x4, scoped, tag = 'scoped memory for tpu_custom_call.1']
    #allocation10 [shape = 'u8[8192]{0}', space=vmem, size = 0x2000, scoped, tag = 'output window, operand 0, single buffered']
    %14 = vsyncpa [#allocation3], 0
    %15 = vsyncpa [#allocation6], 0
    %16 = vsyncpa [#allocation9], 0
    %17 = vsyncpa [#allocation4], 0
    // Predicated region
    $region2: #{tpu_custom_call.1} parent=1 // pred_check
      _
    $region3: #{tpu_custom_call.1} parent=1 // pred_check_branch
      %19 = sbr.rel (0) target = $region5
    $region4: #{tpu_custom_call.1} parent=1 // pred_region
      %21 = vsyncadd [#allocation3], 0
      %s22 = sshll.u32 %s0, 4
      %s23 = int_to_ptr.hbm [resolvable:$true] %s22
      %s24 = sshll.u32 [#allocation2], 4
      %s25 = int_to_ptr.vmem [resolvable:$true] %s24
      %30 = dma.hbm_to_vmem [thread:$0]  %s23, 256, %s25, [#allocation3], 128, 128, 8
    $region5: #{tpu_custom_call.1} parent=1 // pred_fallthru
      _
    // Predicated region
    $region6: #{tpu_custom_call.1} parent=1 // pred_check
      _
    $region7: #{tpu_custom_call.1} parent=1 // pred_check_branch
      %32 = sbr.rel (0) target = $region9
    $region8: #{tpu_custom_call.1} parent=1 // pred_region
      %34 = vsyncadd [#allocation6], 0
      %s35 = sshll.u32 %s1, 4
      %s36 = int_to_ptr.hbm [resolvable:$true] %s35
      %s37 = sshll.u32 [#allocation5], 4
      %s38 = int_to_ptr.vmem [resolvable:$true] %s37
      %43 = dma.hbm_to_vmem [thread:$0]  %s36, 2048, %s38, [#allocation6], 128, 128, 8
    $region9: #{tpu_custom_call.1} parent=1 // pred_fallthru
      _
    // Predicated region
    $region10: #{tpu_custom_call.1} parent=1 // pred_check
      _
    $region11: #{tpu_custom_call.1} parent=1 // pred_check_branch
      %45 = sbr.rel (0) target = $region13
    $region12: #{tpu_custom_call.1} parent=1 // pred_region
      _
    $region13: #{tpu_custom_call.1} parent=1 // pred_fallthru
      _
    // Predicated region
    $region14: #{tpu_custom_call.1} parent=1 // pred_check
      _
    $region15: #{tpu_custom_call.1} parent=1 // pred_check_branch
      %47 = sbr.rel (0) target = $region17
    $region16: #{tpu_custom_call.1} parent=1 // pred_region
      _
    $region17: #{tpu_custom_call.1} parent=1 // pred_fallthru
      _
    // Predicated region
    $region18: #{tpu_custom_call.1} parent=1 // pred_check
      _
    $region19: #{tpu_custom_call.1} parent=1 // pred_check_branch
      %49 = sbr.rel (0) target = $region21
    $region20: #{tpu_custom_call.1} parent=1 // pred_region
      %51 = vsyncadd [#allocation6], 0
      %s52 = sshll.u32 %s4, 4
      %s53 = int_to_ptr.hbm [resolvable:$true] %s52
      %s54 = sshll.u32 [#allocation7], 4
      %s55 = int_to_ptr.vmem [resolvable:$true] %s54
      %60 = dma.hbm_to_vmem [thread:$0]  %s53, 2048, %s55, [#allocation6], 128, 128, 8
    $region21: #{tpu_custom_call.1} parent=1 // pred_fallthru
      _
    // Predicated region
    $region22: #{tpu_custom_call.1} parent=1 // pred_check
      _
    $region23: #{tpu_custom_call.1} parent=1 // pred_check_branch
      %62 = sbr.rel (0) target = $region25
    $region24: #{tpu_custom_call.1} parent=1 // pred_region
      _
    $region25: #{tpu_custom_call.1} parent=1 // pred_fallthru
      _
    // Predicated region
    $region26: #{tpu_custom_call.1} parent=1 // pred_check
      _
    $region27: #{tpu_custom_call.1} parent=1 // pred_check_branch
      %64 = sbr.rel (0) target = $region29
    $region28: #{tpu_custom_call.1} parent=1 // pred_region
      _
    $region29: #{tpu_custom_call.1} parent=1 // pred_fallthru
      _
    // Predicated region
    $region30: #{tpu_custom_call.1} parent=1 // pred_check
      _
    $region31: #{tpu_custom_call.1} parent=1 // pred_check_branch
      %66 = sbr.rel (0) target = $region33
    $region32: #{tpu_custom_call.1} parent=1 // pred_region
      %68 = vsyncadd [#allocation9], 0
      %s69 = sshll.u32 %s7, 4
      %s70 = int_to_ptr.hbm [resolvable:$true] %s69
      %s71 = sshll.u32 [#allocation8], 4
      %s72 = int_to_ptr.vmem [resolvable:$true] %s71
      %77 = dma.hbm_to_vmem [thread:$0]  %s70, 2048, %s72, [#allocation9], 128, 128, 8
    $region33: #{tpu_custom_call.1} parent=1 // pred_fallthru
      _
    // Predicated region
    $region34: #{tpu_custom_call.1} parent=1 // pred_check
      _
    $region35: #{tpu_custom_call.1} parent=1 // pred_check_branch
      %79 = sbr.rel (0) target = $region37
    $region36: #{tpu_custom_call.1} parent=1 // pred_region
      _
    $region37: #{tpu_custom_call.1} parent=1 // pred_fallthru
      _
    // Predicated region
    $region38: #{tpu_custom_call.1} parent=1 // pred_check
      _
    $region39: #{tpu_custom_call.1} parent=1 // pred_check_branch
      %81 = sbr.rel (0) target = $region41
    $region40: #{tpu_custom_call.1} parent=1 // pred_region
      %83 = dma.done [#allocation3], 256
    $region41: #{tpu_custom_call.1} parent=1 // pred_fallthru
      _
    // Predicated region
    $region42: #{tpu_custom_call.1} parent=1 // pred_check
      _
    $region43: #{tpu_custom_call.1} parent=1 // pred_check_branch
      %85 = sbr.rel (0) target = $region45
    $region44: #{tpu_custom_call.1} parent=1 // pred_region
      %87 = dma.done [#allocation6], 2048
    $region45: #{tpu_custom_call.1} parent=1 // pred_fallthru
      _
    // Predicated region
    $region46: #{tpu_custom_call.1} parent=1 // pred_check
      _
    $region47: #{tpu_custom_call.1} parent=1 // pred_check_branch
      %89 = sbr.rel (0) target = $region49
    $region48: #{tpu_custom_call.1} parent=1 // pred_region
      %91 = dma.done [#allocation6], 2048
    $region49: #{tpu_custom_call.1} parent=1 // pred_fallthru
      _
    // Predicated region
    $region50: #{tpu_custom_call.1} parent=1 // pred_check
      _
    $region51: #{tpu_custom_call.1} parent=1 // pred_check_branch
      %93 = sbr.rel (0) target = $region53
    $region52: #{tpu_custom_call.1} parent=1 // pred_region
      %95 = dma.done [#allocation9], 2048
    $region53: #{tpu_custom_call.1} parent=1 // pred_fallthru
      _
    %v96 = vld [vmem:[#allocation2] sm:$0xff]
    %v97 = vld [vmem:[#allocation2 + $0x8] sm:$0xff]
    %v98 = vld [vmem:[#allocation5] sm:$0xff]
    %v99 = vld [vmem:[#allocation5 + $0x8] sm:$0xff]
    %v100 = vld [vmem:[#allocation5 + $0x10] sm:$0xff]
    %v101 = vld [vmem:[#allocation5 + $0x18] sm:$0xff]
    %v102 = vld [vmem:[#allocation5 + $0x20] sm:$0xff]
    %v103 = vld [vmem:[#allocation5 + $0x28] sm:$0xff]
    %v104 = vld [vmem:[#allocation5 + $0x30] sm:$0xff]
    %v105 = vld [vmem:[#allocation5 + $0x38] sm:$0xff]
    %v106 = vld [vmem:[#allocation5 + $0x40] sm:$0xff]
    %v107 = vld [vmem:[#allocation5 + $0x48] sm:$0xff]
    %v108 = vld [vmem:[#allocation5 + $0x50] sm:$0xff]
    %v109 = vld [vmem:[#allocation5 + $0x58] sm:$0xff]
    %v110 = vld [vmem:[#allocation5 + $0x60] sm:$0xff]
    %v111 = vld [vmem:[#allocation5 + $0x68] sm:$0xff]
    %v112 = vld [vmem:[#allocation5 + $0x70] sm:$0xff]
    %v113 = vld [vmem:[#allocation5 + $0x78] sm:$0xff]
    %114 = vmatpush.msra.mxu0 %v113
    %115 = vmatpush.msra.mxu0 %v112
    %116 = vmatpush.msra.mxu0 %v111
    %117 = vmatpush.msra.mxu0 %v110
    %118 = vmatpush.msra.mxu0 %v109
    %119 = vmatpush.msra.mxu0 %v108
    %120 = vmatpush.msra.mxu0 %v107
    %121 = vmatpush.msra.mxu0 %v106
    %122 = vmatpush.msra.mxu0 %v105
    %123 = vmatpush.msra.mxu0 %v104
    %124 = vmatpush.msra.mxu0 %v103
    %125 = vmatpush.msra.mxu0 %v102
    %126 = vmatpush.msra.mxu0 %v101
    %127 = vmatpush.msra.mxu0 %v100
    %128 = vmatpush.msra.mxu0 %v99
    %129 = vmatpush.msra.mxu0 %v98
    %130 = vmatmul.f32.gmra.mxu0 %v96
    %v131 = vpop.f32.mrf.mxu0
    %v132 = vadd.f32 0.0, %v131
    %133 = vmatmul.f32.gmra.mxu0 %v97
    %v134 = vpop.f32.mrf.mxu0
    %v135 = vadd.f32 0.0, %v134
    %136 = vdwg.mxu0
    %v137 = vld [vmem:[%s2] sm:$0x1]
    %v138 = vld [vmem:[%s3] sm:$0x1]
    %139 = vadd.xlane.f32.xlu0 %v132
    %v140 = vpop.xlane.xlu0 %139
    %141 = vadd.xlane.f32.xlu0 %v135
    %v142 = vpop.xlane.xlu0 %141
    %v143 = vmul.f32 %v140, 0.03125
    %v144 = vmul.f32 %v142, 0.03125
    %v145 = vmul.f32 %v132, %v132
    %v146 = vmul.f32 %v135, %v135
    %147 = vadd.xlane.f32.xlu0 %v145
    %v148 = vpop.xlane.xlu0 %147
    %149 = vadd.xlane.f32.xlu0 %v146
    %v150 = vpop.xlane.xlu0 %149
    %v151 = vmul.f32 %v148, 0.03125
    %v152 = vmul.f32 %v150, 0.03125
    %v153 = vmul.f32 %v143, %v143
    %v154 = vmul.f32 %v144, %v144
    %v155 = vsub.f32 %v151, %v153
    %v156 = vsub.f32 %v152, %v154
    %v157 = vsub.f32 %v132, %v143
    %v158 = vsub.f32 %v135, %v144
    %v159 = vmax.f32 %v155, 0.0
    %v160 = vmax.f32 %v156, 0.0
    %v161 = vadd.f32 %v159, 0.001
    %v162 = vadd.f32 %v160, 0.001
    %v163 = vrsqrt.pop %v161
    %v164 = vmul.f32 %v163, %v161
    %v165 = vmul.f32 %v164, %v163
    %v166 = vmul.f32 0.5, %v165
    %v167 = vsub.f32 1.5, %v166
    %v168 = vmul.f32 %v163, %v167
    %vm169 = vweird.f32 %v161
    %vm170 = vweird.f32 %v163
    %vm171 = vmor %vm169, %vm170
    %v172 = vsel %vm171, %v163, %v168
    %v173 = vrsqrt.pop %v162
    %v174 = vmul.f32 %v173, %v162
    %v175 = vmul.f32 %v174, %v173
    %v176 = vmul.f32 0.5, %v175
    %v177 = vsub.f32 1.5, %v176
    %v178 = vmul.f32 %v173, %v177
    %vm179 = vweird.f32 %v162
    %vm180 = vweird.f32 %v173
    %vm181 = vmor %vm179, %vm180
    %v182 = vsel %vm181, %v173, %v178
    %v183 = vmul.f32 %v157, %v172
    %v184 = vmul.f32 %v158, %v182
    %v186 = vperm.slane %v137, 0
    %v188 = vmul.f32 %v183, %v186
    %v189 = vmul.f32 %v184, %v186
    %v191 = vperm.slane %v138, 0
    %v193 = vadd.f32 %v188, %v191
    %v194 = vadd.f32 %v189, %v191
    %v195 = vxor.u32 %v193, 2147483648
    %v196 = vxor.u32 %v194, 2147483648
    %v197 = vmul.f32 %v195, 1.442695
    %v198 = vpow.pop %v197
    %v199 = vmul.f32 %v196, 1.442695
    %v200 = vpow.pop %v199
    %v201 = vadd.f32 %v198, 1.0
    %v202 = vadd.f32 %v200, 1.0
    %v203 = vrcp.pop %v201
    %v204 = vmul.f32 %v201, %v203
    %v205 = vsub.f32 1.0, %v204
    %v206 = vmul.f32 %v203, %v205
    %v207 = vadd.f32 %v203, %v206
    %vm208 = vweird.f32 %v201
    %vm209 = vweird.f32 %v203
    %vm210 = vmor %vm208, %vm209
    %v211 = vsel %vm210, %v203, %v207
    %v212 = vand.u32 2147483647, %v201
    %vm213 = vcmp.eq.f32.partialorder %v212, 8.507059e+37
    %v214 = vand.u32 %v201, 2147483648
    %v215 = vor.u32 1.1754944e-38, %v214
    %v216 = vsel %vm213, %v215, %v211
    %v217 = vmul.f32 1.0, %v216
    %v218 = vrcp.pop %v202
    %v219 = vmul.f32 %v202, %v218
    %v220 = vsub.f32 1.0, %v219
    %v221 = vmul.f32 %v218, %v220
    %v222 = vadd.f32 %v218, %v221
    %vm223 = vweird.f32 %v202
    %vm224 = vweird.f32 %v218
    %vm225 = vmor %vm223, %vm224
    %v226 = vsel %vm225, %v218, %v222
    %v227 = vand.u32 2147483647, %v202
    %vm228 = vcmp.eq.f32.partialorder %v227, 8.507059e+37
    %v229 = vand.u32 %v202, 2147483648
    %v230 = vor.u32 1.1754944e-38, %v229
    %v231 = vsel %vm228, %v230, %v226
    %v232 = vmul.f32 1.0, %v231
    %v233 = vmul.f32 %v193, %v217
    %v234 = vmul.f32 %v194, %v232
    %v235 = vld [vmem:[#allocation7] sm:$0xff]
    %v236 = vld [vmem:[#allocation7 + $0x8] sm:$0xff]
    %v237 = vld [vmem:[#allocation7 + $0x10] sm:$0xff]
    %v238 = vld [vmem:[#allocation7 + $0x18] sm:$0xff]
    %v239 = vld [vmem:[#allocation7 + $0x20] sm:$0xff]
    %v240 = vld [vmem:[#allocation7 + $0x28] sm:$0xff]
    %v241 = vld [vmem:[#allocation7 + $0x30] sm:$0xff]
    %v242 = vld [vmem:[#allocation7 + $0x38] sm:$0xff]
    %v243 = vld [vmem:[#allocation7 + $0x40] sm:$0xff]
    %v244 = vld [vmem:[#allocation7 + $0x48] sm:$0xff]
    %v245 = vld [vmem:[#allocation7 + $0x50] sm:$0xff]
    %v246 = vld [vmem:[#allocation7 + $0x58] sm:$0xff]
    %v247 = vld [vmem:[#allocation7 + $0x60] sm:$0xff]
    %v248 = vld [vmem:[#allocation7 + $0x68] sm:$0xff]
    %v249 = vld [vmem:[#allocation7 + $0x70] sm:$0xff]
    %v250 = vld [vmem:[#allocation7 + $0x78] sm:$0xff]
    %251 = vmatpush.msra.mxu0 %v250
    %252 = vmatpush.msra.mxu0 %v249
    %253 = vmatpush.msra.mxu0 %v248
    %254 = vmatpush.msra.mxu0 %v247
    %255 = vmatpush.msra.mxu0 %v246
    %256 = vmatpush.msra.mxu0 %v245
    %257 = vmatpush.msra.mxu0 %v244
    %258 = vmatpush.msra.mxu0 %v243
    %259 = vmatpush.msra.mxu0 %v242
    %260 = vmatpush.msra.mxu0 %v241
    %261 = vmatpush.msra.mxu0 %v240
    %262 = vmatpush.msra.mxu0 %v239
    %263 = vmatpush.msra.mxu0 %v238
    %264 = vmatpush.msra.mxu0 %v237
    %265 = vmatpush.msra.mxu0 %v236
    %266 = vmatpush.msra.mxu0 %v235
    %267 = vmatmul.f32.gmra.mxu0 %v233
    %v268 = vpop.f32.mrf.mxu0
    %v269 = vadd.f32 0.0, %v268
    %270 = vmatmul.f32.gmra.mxu0 %v234
    %v271 = vpop.f32.mrf.mxu0
    %v272 = vadd.f32 0.0, %v271
    %273 = vdwg.mxu0
    %v274 = vld [vmem:[%s5] sm:$0x1]
    %v275 = vld [vmem:[%s6] sm:$0x1]
    %276 = vadd.xlane.f32.xlu0 %v269
    %v277 = vpop.xlane.xlu0 %276
    %278 = vadd.xlane.f32.xlu0 %v272
    %v279 = vpop.xlane.xlu0 %278
    %v280 = vmul.f32 %v277, 0.03125
    %v281 = vmul.f32 %v279, 0.03125
    %v282 = vmul.f32 %v269, %v269
    %v283 = vmul.f32 %v272, %v272
    %284 = vadd.xlane.f32.xlu0 %v282
    %v285 = vpop.xlane.xlu0 %284
    %286 = vadd.xlane.f32.xlu0 %v283
    %v287 = vpop.xlane.xlu0 %286
    %v288 = vmul.f32 %v285, 0.03125
    %v289 = vmul.f32 %v287, 0.03125
    %v290 = vmul.f32 %v280, %v280
    %v291 = vmul.f32 %v281, %v281
    %v292 = vsub.f32 %v288, %v290
    %v293 = vsub.f32 %v289, %v291
    %v294 = vsub.f32 %v269, %v280
    %v295 = vsub.f32 %v272, %v281
    %v296 = vmax.f32 %v292, 0.0
    %v297 = vmax.f32 %v293, 0.0
    %v298 = vadd.f32 %v296, 0.001
    %v299 = vadd.f32 %v297, 0.001
    %v300 = vrsqrt.pop %v298
    %v301 = vmul.f32 %v300, %v298
    %v302 = vmul.f32 %v301, %v300
    %v303 = vmul.f32 0.5, %v302
    %v304 = vsub.f32 1.5, %v303
    %v305 = vmul.f32 %v300, %v304
    %vm306 = vweird.f32 %v298
    %vm307 = vweird.f32 %v300
    %vm308 = vmor %vm306, %vm307
    %v309 = vsel %vm308, %v300, %v305
    %v310 = vrsqrt.pop %v299
    %v311 = vmul.f32 %v310, %v299
    %v312 = vmul.f32 %v311, %v310
    %v313 = vmul.f32 0.5, %v312
    %v314 = vsub.f32 1.5, %v313
    %v315 = vmul.f32 %v310, %v314
    %vm316 = vweird.f32 %v299
    %vm317 = vweird.f32 %v310
    %vm318 = vmor %vm316, %vm317
    %v319 = vsel %vm318, %v310, %v315
    %v320 = vmul.f32 %v294, %v309
    %v321 = vmul.f32 %v295, %v319
    %v323 = vperm.slane %v274, 0
    %v325 = vmul.f32 %v320, %v323
    %v326 = vmul.f32 %v321, %v323
    %v328 = vperm.slane %v275, 0
    %v330 = vadd.f32 %v325, %v328
    %v331 = vadd.f32 %v326, %v328
    %v332 = vxor.u32 %v330, 2147483648
    %v333 = vxor.u32 %v331, 2147483648
    %v334 = vmul.f32 %v332, 1.442695
    %v335 = vpow.pop %v334
    %v336 = vmul.f32 %v333, 1.442695
    %v337 = vpow.pop %v336
    %v338 = vadd.f32 %v335, 1.0
    %v339 = vadd.f32 %v337, 1.0
    %v340 = vrcp.pop %v338
    %v341 = vmul.f32 %v338, %v340
    %v342 = vsub.f32 1.0, %v341
    %v343 = vmul.f32 %v340, %v342
    %v344 = vadd.f32 %v340, %v343
    %vm345 = vweird.f32 %v338
    %vm346 = vweird.f32 %v340
    %vm347 = vmor %vm345, %vm346
    %v348 = vsel %vm347, %v340, %v344
    %v349 = vand.u32 2147483647, %v338
    %vm350 = vcmp.eq.f32.partialorder %v349, 8.507059e+37
    %v351 = vand.u32 %v338, 2147483648
    %v352 = vor.u32 1.1754944e-38, %v351
    %v353 = vsel %vm350, %v352, %v348
    %v354 = vmul.f32 1.0, %v353
    %v355 = vrcp.pop %v339
    %v356 = vmul.f32 %v339, %v355
    %v357 = vsub.f32 1.0, %v356
    %v358 = vmul.f32 %v355, %v357
    %v359 = vadd.f32 %v355, %v358
    %vm360 = vweird.f32 %v339
    %vm361 = vweird.f32 %v355
    %vm362 = vmor %vm360, %vm361
    %v363 = vsel %vm362, %v355, %v359
    %v364 = vand.u32 2147483647, %v339
    %vm365 = vcmp.eq.f32.partialorder %v364, 8.507059e+37
    %v366 = vand.u32 %v339, 2147483648
    %v367 = vor.u32 1.1754944e-38, %v366
    %v368 = vsel %vm365, %v367, %v363
    %v369 = vmul.f32 1.0, %v368
    %v370 = vmul.f32 %v330, %v354
    %v371 = vmul.f32 %v331, %v369
    %v372 = vld [vmem:[#allocation8] sm:$0xff]
    %v373 = vld [vmem:[#allocation8 + $0x8] sm:$0xff]
    %v374 = vld [vmem:[#allocation8 + $0x10] sm:$0xff]
    %v375 = vld [vmem:[#allocation8 + $0x18] sm:$0xff]
    %v376 = vld [vmem:[#allocation8 + $0x20] sm:$0xff]
    %v377 = vld [vmem:[#allocation8 + $0x28] sm:$0xff]
    %v378 = vld [vmem:[#allocation8 + $0x30] sm:$0xff]
    %v379 = vld [vmem:[#allocation8 + $0x38] sm:$0xff]
    %v380 = vld [vmem:[#allocation8 + $0x40] sm:$0xff]
    %v381 = vld [vmem:[#allocation8 + $0x48] sm:$0xff]
    %v382 = vld [vmem:[#allocation8 + $0x50] sm:$0xff]
    %v383 = vld [vmem:[#allocation8 + $0x58] sm:$0xff]
    %v384 = vld [vmem:[#allocation8 + $0x60] sm:$0xff]
    %v385 = vld [vmem:[#allocation8 + $0x68] sm:$0xff]
    %v386 = vld [vmem:[#allocation8 + $0x70] sm:$0xff]
    %v387 = vld [vmem:[#allocation8 + $0x78] sm:$0xff]
    %v388 = vld [vmem:[%s8] sm:$0x1]
    %v390 = vperm.slane %v388, 0
    %392 = vmatpush.msra.mxu0 %v387
    %393 = vmatpush.msra.mxu0 %v386
    %394 = vmatpush.msra.mxu0 %v385
    %395 = vmatpush.msra.mxu0 %v384
    %396 = vmatpush.msra.mxu0 %v383
    %397 = vmatpush.msra.mxu0 %v382
    %398 = vmatpush.msra.mxu0 %v381
    %399 = vmatpush.msra.mxu0 %v380
    %400 = vmatpush.msra.mxu0 %v379
    %401 = vmatpush.msra.mxu0 %v378
    %402 = vmatpush.msra.mxu0 %v377
    %403 = vmatpush.msra.mxu0 %v376
    %404 = vmatpush.msra.mxu0 %v375
    %405 = vmatpush.msra.mxu0 %v374
    %406 = vmatpush.msra.mxu0 %v373
    %407 = vmatpush.msra.mxu0 %v372
    %408 = vmatmul.f32.gmra.mxu0 %v370
    %v409 = vpop.f32.mrf.mxu0
    %v410 = vadd.f32 %v390, %v409
    %411 = vmatmul.f32.gmra.mxu0 %v371
    %v412 = vpop.f32.mrf.mxu0
    %v413 = vadd.f32 %v390, %v412
    %414 = vdwg.mxu0
    %v415 = vtanh.pop %v410
    %v416 = vtanh.pop %v413
    %417 = vst [vmem:[#allocation10] sm:$0xff] %v415
    %418 = vst [vmem:[#allocation10 + $0x8] sm:$0xff] %v416
    // Predicated region
    $region54: #{tpu_custom_call.1} parent=1 // pred_check
      _
    $region55: #{tpu_custom_call.1} parent=1 // pred_check_branch
      %420 = sbr.rel (0) target = $region57
    $region56: #{tpu_custom_call.1} parent=1 // pred_region
      %422 = vsyncadd [#allocation4], 0
      %s423 = sshll.u32 [#allocation10], 4
      %s424 = int_to_ptr.vmem [resolvable:$true] %s423
      %s425 = sshll.u32 %s9, 4
      %s426 = int_to_ptr.hbm [resolvable:$true] %s425
      %431 = dma.vmem_to_hbm [thread:$0]  %s424, 256, %s426, [#allocation4], 128, 128, 8
    $region57: #{tpu_custom_call.1} parent=1 // pred_fallthru
      _
    // Predicated region
    $region58: #{tpu_custom_call.1} parent=1 // pred_check
      _
    $region59: #{tpu_custom_call.1} parent=1 // pred_check_branch
      %433 = sbr.rel (0) target = $region61
    $region60: #{tpu_custom_call.1} parent=1 // pred_region
      %435 = dma.done [#allocation4], 256
    $region61: #{tpu_custom_call.1} parent=1 // pred_fallthru
      _
    %436 = vsyncpa [#allocation3], 1
    %437 = vsyncpa [#allocation6], 1
    %438 = vsyncpa [#allocation9], 1
    %439 = vsyncpa [#allocation4], 1

// kernel: tpu_custom_call.1
$region0: #{tpu_custom_call.1}
  #allocation0 [shape = 'u32[]', space=smem, size = 0x4, offset = 0x4, fixed_abs, tag = 'smem constant byte address 0x4 - core index']
  #allocation1 [shape = 'u32[72,128]{1,0:T(1,128)}', space=vmem, size = 0x9000, scoped, tag = 'internal scratch']
  %s0 = inlined_call_operand.hbm [shape: f32[16,128], index: 0, kind: input, shape index: {}]
  %s1 = inlined_call_operand.hbm [shape: f32[128,128], index: 1, kind: input, shape index: {}]
  %s2 = inlined_call_operand.vmem [shape: f32[1,128], index: 2, kind: input, shape index: {}]
  %s3 = inlined_call_operand.vmem [shape: f32[1,128], index: 3, kind: input, shape index: {}]
  %s4 = inlined_call_operand.hbm [shape: f32[128,128], index: 4, kind: input, shape index: {}]
  %s5 = inlined_call_operand.vmem [shape: f32[1,128], index: 5, kind: input, shape index: {}]
  %s6 = inlined_call_operand.vmem [shape: f32[1,128], index: 6, kind: input, shape index: {}]
  %s7 = inlined_call_operand.hbm [shape: f32[128,128], index: 7, kind: input, shape index: {}]
  %s8 = inlined_call_operand.vmem [shape: f32[1,128], index: 8, kind: input, shape index: {}]
  %s9 = inlined_call_operand.hbm [shape: f32[16,128], index: 9, kind: output, shape index: {}]
  %s10 = sld [smem:[#allocation0]]
  $region62: #{tpu_custom_call.1} parent=0
    _
  %s12 = ssub.s32 1, %s10
  %s13 = scalar_select 0, %s12, %s10
  $region1: #{tpu_custom_call.1} parent=0
    #allocation2 [shape = 'u8[8192]{0}', space=vmem, size = 0x2000, scoped, tag = 'input window, operand 0, single buffered']
    #allocation3 [shape = 's32[1]{0}', space=sflag, size = 0x4, scoped, tag = 'scoped memory for tpu_custom_call.1']
    #allocation4 [shape = 's32[1]{0}', space=sflag, size = 0x4, scoped, tag = 'scoped memory for tpu_custom_call.1']
    #allocation5 [shape = 'u8[65536]{0}', space=vmem, size = 0x10000, scoped, tag = 'input window, operand 1, single buffered']
    #allocation6 [shape = 's32[1]{0}', space=sflag, size = 0x4, scoped, tag = 'scoped memory for tpu_custom_call.1']
    #allocation7 [shape = 'u8[65536]{0}', space=vmem, size = 0x10000, scoped, tag = 'input window, operand 4, single buffered']
    #allocation8 [shape = 'u8[65536]{0}', space=vmem, size = 0x10000, scoped, tag = 'input window, operand 7, single buffered']
    #allocation9 [shape = 's32[1]{0}', space=sflag, size = 0x4, scoped, tag = 'scoped memory for tpu_custom_call.1']
    #allocation10 [shape = 'u8[8192]{0}', space=vmem, size = 0x2000, scoped, tag = 'output window, operand 0, single buffered']
    %14 = vsyncpa [#allocation3], 0
    %15 = vsyncpa [#allocation6], 0
    %16 = vsyncpa [#allocation9], 0
    %17 = vsyncpa [#allocation4], 0
    // Predicated region
    $region2: #{tpu_custom_call.1} parent=1 // pred_check
      _
    $region3: #{tpu_custom_call.1} parent=1 // pred_check_branch
      %19 = sbr.rel (0) target = $region5
    $region4: #{tpu_custom_call.1} parent=1 // pred_region
      %21 = vsyncadd [#allocation3], 0
      %s22 = sshll.u32 %s0, 4
      %s23 = int_to_ptr.hbm [resolvable:$true] %s22
      %s24 = sshll.u32 [#allocation2], 4
      %s25 = int_to_ptr.vmem [resolvable:$true] %s24
      %30 = dma.hbm_to_vmem [thread:$0]  %s23, 256, %s25, [#allocation3], 128, 128, 8
    $region5: #{tpu_custom_call.1} parent=1 // pred_fallthru
      _
    // Predicated region
    $region6: #{tpu_custom_call.1} parent=1 // pred_check
      _
    $region7: #{tpu_custom_call.1} parent=1 // pred_check_branch
      %32 = sbr.rel (0) target = $region9
    $region8: #{tpu_custom_call.1} parent=1 // pred_region
      %34 = vsyncadd [#allocation6], 0
      %s35 = sshll.u32 %s1, 4
      %s36 = int_to_ptr.hbm [resolvable:$true] %s35
      %s37 = sshll.u32 [#allocation5], 4
      %s38 = int_to_ptr.vmem [resolvable:$true] %s37
      %43 = dma.hbm_to_vmem [thread:$0]  %s36, 2048, %s38, [#allocation6], 128, 128, 8
    $region9: #{tpu_custom_call.1} parent=1 // pred_fallthru
      _
    // Predicated region
    $region10: #{tpu_custom_call.1} parent=1 // pred_check
      _
    $region11: #{tpu_custom_call.1} parent=1 // pred_check_branch
      %45 = sbr.rel (0) target = $region13
    $region12: #{tpu_custom_call.1} parent=1 // pred_region
      _
    $region13: #{tpu_custom_call.1} parent=1 // pred_fallthru
      _
    // Predicated region
    $region14: #{tpu_custom_call.1} parent=1 // pred_check
      _
    $region15: #{tpu_custom_call.1} parent=1 // pred_check_branch
      %47 = sbr.rel (0) target = $region17
    $region16: #{tpu_custom_call.1} parent=1 // pred_region
      _
    $region17: #{tpu_custom_call.1} parent=1 // pred_fallthru
      _
    // Predicated region
    $region18: #{tpu_custom_call.1} parent=1 // pred_check
      _
    $region19: #{tpu_custom_call.1} parent=1 // pred_check_branch
      %49 = sbr.rel (0) target = $region21
    $region20: #{tpu_custom_call.1} parent=1 // pred_region
      %51 = vsyncadd [#allocation6], 0
      %s52 = sshll.u32 %s4, 4
      %s53 = int_to_ptr.hbm [resolvable:$true] %s52
      %s54 = sshll.u32 [#allocation7], 4
      %s55 = int_to_ptr.vmem [resolvable:$true] %s54
      %60 = dma.hbm_to_vmem [thread:$0]  %s53, 2048, %s55, [#allocation6], 128, 128, 8
    $region21: #{tpu_custom_call.1} parent=1 // pred_fallthru
      _
    // Predicated region
    $region22: #{tpu_custom_call.1} parent=1 // pred_check
      _
    $region23: #{tpu_custom_call.1} parent=1 // pred_check_branch
      %62 = sbr.rel (0) target = $region25
    $region24: #{tpu_custom_call.1} parent=1 // pred_region
      _
    $region25: #{tpu_custom_call.1} parent=1 // pred_fallthru
      _
    // Predicated region
    $region26: #{tpu_custom_call.1} parent=1 // pred_check
      _
    $region27: #{tpu_custom_call.1} parent=1 // pred_check_branch
      %64 = sbr.rel (0) target = $region29
    $region28: #{tpu_custom_call.1} parent=1 // pred_region
      _
    $region29: #{tpu_custom_call.1} parent=1 // pred_fallthru
      _
    // Predicated region
    $region30: #{tpu_custom_call.1} parent=1 // pred_check
      _
    $region31: #{tpu_custom_call.1} parent=1 // pred_check_branch
      %66 = sbr.rel (0) target = $region33
    $region32: #{tpu_custom_call.1} parent=1 // pred_region
      %68 = vsyncadd [#allocation9], 0
      %s69 = sshll.u32 %s7, 4
      %s70 = int_to_ptr.hbm [resolvable:$true] %s69
      %s71 = sshll.u32 [#allocation8], 4
      %s72 = int_to_ptr.vmem [resolvable:$true] %s71
      %77 = dma.hbm_to_vmem [thread:$0]  %s70, 2048, %s72, [#allocation9], 128, 128, 8
    $region33: #{tpu_custom_call.1} parent=1 // pred_fallthru
      _
    // Predicated region
    $region34: #{tpu_custom_call.1} parent=1 // pred_check
      _
    $region35: #{tpu_custom_call.1} parent=1 // pred_check_branch
      %79 = sbr.rel (0) target = $region37
    $region36: #{tpu_custom_call.1} parent=1 // pred_region
      _
    $region37: #{tpu_custom_call.1} parent=1 // pred_fallthru
      _
    // Predicated region
    $region38: #{tpu_custom_call.1} parent=1 // pred_check
      _
    $region39: #{tpu_custom_call.1} parent=1 // pred_check_branch
      %81 = sbr.rel (0) target = $region41
    $region40: #{tpu_custom_call.1} parent=1 // pred_region
      %83 = dma.done [#allocation3], 256
    $region41: #{tpu_custom_call.1} parent=1 // pred_fallthru
      _
    // Predicated region
    $region42: #{tpu_custom_call.1} parent=1 // pred_check
      _
    $region43: #{tpu_custom_call.1} parent=1 // pred_check_branch
      %85 = sbr.rel (0) target = $region45
    $region44: #{tpu_custom_call.1} parent=1 // pred_region
      %87 = dma.done [#allocation6], 2048
    $region45: #{tpu_custom_call.1} parent=1 // pred_fallthru
      _
    // Predicated region
    $region46: #{tpu_custom_call.1} parent=1 // pred_check
      _
    $region47: #{tpu_custom_call.1} parent=1 // pred_check_branch
      %89 = sbr.rel (0) target = $region49
    $region48: #{tpu_custom_call.1} parent=1 // pred_region
      %91 = dma.done [#allocation6], 2048
    $region49: #{tpu_custom_call.1} parent=1 // pred_fallthru
      _
    // Predicated region
    $region50: #{tpu_custom_call.1} parent=1 // pred_check
      _
    $region51: #{tpu_custom_call.1} parent=1 // pred_check_branch
      %93 = sbr.rel (0) target = $region53
    $region52: #{tpu_custom_call.1} parent=1 // pred_region
      %95 = dma.done [#allocation9], 2048
    $region53: #{tpu_custom_call.1} parent=1 // pred_fallthru
      _
    %v96 = vld [vmem:[#allocation2] sm:$0xff]
    %v97 = vld [vmem:[#allocation2 + $0x8] sm:$0xff]
    %v98 = vld [vmem:[#allocation5] sm:$0xff]
    %v99 = vld [vmem:[#allocation5 + $0x8] sm:$0xff]
    %v100 = vld [vmem:[#allocation5 + $0x10] sm:$0xff]
    %v101 = vld [vmem:[#allocation5 + $0x18] sm:$0xff]
    %v102 = vld [vmem:[#allocation5 + $0x20] sm:$0xff]
    %v103 = vld [vmem:[#allocation5 + $0x28] sm:$0xff]
    %v104 = vld [vmem:[#allocation5 + $0x30] sm:$0xff]
    %v105 = vld [vmem:[#allocation5 + $0x38] sm:$0xff]
    %v106 = vld [vmem:[#allocation5 + $0x40] sm:$0xff]
    %v107 = vld [vmem:[#allocation5 + $0x48] sm:$0xff]
    %v108 = vld [vmem:[#allocation5 + $0x50] sm:$0xff]
    %v109 = vld [vmem:[#allocation5 + $0x58] sm:$0xff]
    %v110 = vld [vmem:[#allocation5 + $0x60] sm:$0xff]
    %v111 = vld [vmem:[#allocation5 + $0x68] sm:$0xff]
    %v112 = vld [vmem:[#allocation5 + $0x70] sm:$0xff]
    %v113 = vld [vmem:[#allocation5 + $0x78] sm:$0xff]
    %114 = vmatpush.msra.mxu0 %v113
    %115 = vmatpush.msra.mxu0 %v112
    %116 = vmatpush.msra.mxu0 %v111
    %117 = vmatpush.msra.mxu0 %v110
    %118 = vmatpush.msra.mxu0 %v109
    %119 = vmatpush.msra.mxu0 %v108
    %120 = vmatpush.msra.mxu0 %v107
    %121 = vmatpush.msra.mxu0 %v106
    %122 = vmatpush.msra.mxu0 %v105
    %123 = vmatpush.msra.mxu0 %v104
    %124 = vmatpush.msra.mxu0 %v103
    %125 = vmatpush.msra.mxu0 %v102
    %126 = vmatpush.msra.mxu0 %v101
    %127 = vmatpush.msra.mxu0 %v100
    %128 = vmatpush.msra.mxu0 %v99
    %129 = vmatpush.msra.mxu0 %v98
    %130 = vmatmul.f32.gmra.mxu0 %v96
    %v131 = vpop.f32.mrf.mxu0
    %v132 = vadd.f32 0.0, %v131
    %133 = vmatmul.f32.gmra.mxu0 %v97
    %v134 = vpop.f32.mrf.mxu0
    %v135 = vadd.f32 0.0, %v134
    %136 = vdwg.mxu0
    %v137 = vld [vmem:[%s2] sm:$0x1]
    %v138 = vld [vmem:[%s3] sm:$0x1]
    %139 = vadd.xlane.f32.xlu0 %v132
    %v140 = vpop.xlane.xlu0 %139
    %141 = vadd.xlane.f32.xlu0 %v135
    %v142 = vpop.xlane.xlu0 %141
    %v143 = vmul.f32 %v140, 0.03125
    %v144 = vmul.f32 %v142, 0.03125
    %v145 = vmul.f32 %v132, %v132
    %v146 = vmul.f32 %v135, %v135
    %147 = vadd.xlane.f32.xlu0 %v145
    %v148 = vpop.xlane.xlu0 %147
    %149 = vadd.xlane.f32.xlu0 %v146
    %v150 = vpop.xlane.xlu0 %149
    %v151 = vmul.f32 %v148, 0.03125
    %v152 = vmul.f32 %v150, 0.03125
    %v153 = vmul.f32 %v143, %v143
    %v154 = vmul.f32 %v144, %v144
    %v155 = vsub.f32 %v151, %v153
    %v156 = vsub.f32 %v152, %v154
    %v157 = vsub.f32 %v132, %v143
    %v158 = vsub.f32 %v135, %v144
    %v159 = vmax.f32 %v155, 0.0
    %v160 = vmax.f32 %v156, 0.0
    %v161 = vadd.f32 %v159, 0.001
    %v162 = vadd.f32 %v160, 0.001
    %v163 = vrsqrt.pop %v161
    %v164 = vmul.f32 %v163, %v161
    %v165 = vmul.f32 %v164, %v163
    %v166 = vmul.f32 0.5, %v165
    %v167 = vsub.f32 1.5, %v166
    %v168 = vmul.f32 %v163, %v167
    %vm169 = vweird.f32 %v161
    %vm170 = vweird.f32 %v163
    %vm171 = vmor %vm169, %vm170
    %v172 = vsel %vm171, %v163, %v168
    %v173 = vrsqrt.pop %v162
    %v174 = vmul.f32 %v173, %v162
    %v175 = vmul.f32 %v174, %v173
    %v176 = vmul.f32 0.5, %v175
    %v177 = vsub.f32 1.5, %v176
    %v178 = vmul.f32 %v173, %v177
    %vm179 = vweird.f32 %v162
    %vm180 = vweird.f32 %v173
    %vm181 = vmor %vm179, %vm180
    %v182 = vsel %vm181, %v173, %v178
    %v183 = vmul.f32 %v157, %v172
    %v184 = vmul.f32 %v158, %v182
    %v186 = vperm.slane %v137, 0
    %v188 = vmul.f32 %v183, %v186
    %v189 = vmul.f32 %v184, %v186
    %v191 = vperm.slane %v138, 0
    %v193 = vadd.f32 %v188, %v191
    %v194 = vadd.f32 %v189, %v191
    %v195 = vxor.u32 %v193, 2147483648
    %v196 = vxor.u32 %v194, 2147483648
    %v197 = vmul.f32 %v195, 1.442695
    %v198 = vpow.pop %v197
    %v199 = vmul.f32 %v196, 1.442695
    %v200 = vpow.pop %v199
    %v201 = vadd.f32 %v198, 1.0
    %v202 = vadd.f32 %v200, 1.0
    %v203 = vrcp.pop %v201
    %v204 = vmul.f32 %v201, %v203
    %v205 = vsub.f32 1.0, %v204
    %v206 = vmul.f32 %v203, %v205
    %v207 = vadd.f32 %v203, %v206
    %vm208 = vweird.f32 %v201
    %vm209 = vweird.f32 %v203
    %vm210 = vmor %vm208, %vm209
    %v211 = vsel %vm210, %v203, %v207
    %v212 = vand.u32 2147483647, %v201
    %vm213 = vcmp.eq.f32.partialorder %v212, 8.507059e+37
    %v214 = vand.u32 %v201, 2147483648
    %v215 = vor.u32 1.1754944e-38, %v214
    %v216 = vsel %vm213, %v215, %v211
    %v217 = vmul.f32 1.0, %v216
    %v218 = vrcp.pop %v202
    %v219 = vmul.f32 %v202, %v218
    %v220 = vsub.f32 1.0, %v219
    %v221 = vmul.f32 %v218, %v220
    %v222 = vadd.f32 %v218, %v221
    %vm223 = vweird.f32 %v202
    %vm224 = vweird.f32 %v218
    %vm225 = vmor %vm223, %vm224
    %v226 = vsel %vm225, %v218, %v222
    %v227 = vand.u32 2147483647, %v202
    %vm228 = vcmp.eq.f32.partialorder %v227, 8.507059e+37
    %v229 = vand.u32 %v202, 2147483648
    %v230 = vor.u32 1.1754944e-38, %v229
    %v231 = vsel %vm228, %v230, %v226
    %v232 = vmul.f32 1.0, %v231
    %v233 = vmul.f32 %v193, %v217
    %v234 = vmul.f32 %v194, %v232
    %v235 = vld [vmem:[#allocation7] sm:$0xff]
    %v236 = vld [vmem:[#allocation7 + $0x8] sm:$0xff]
    %v237 = vld [vmem:[#allocation7 + $0x10] sm:$0xff]
    %v238 = vld [vmem:[#allocation7 + $0x18] sm:$0xff]
    %v239 = vld [vmem:[#allocation7 + $0x20] sm:$0xff]
    %v240 = vld [vmem:[#allocation7 + $0x28] sm:$0xff]
    %v241 = vld [vmem:[#allocation7 + $0x30] sm:$0xff]
    %v242 = vld [vmem:[#allocation7 + $0x38] sm:$0xff]
    %v243 = vld [vmem:[#allocation7 + $0x40] sm:$0xff]
    %v244 = vld [vmem:[#allocation7 + $0x48] sm:$0xff]
    %v245 = vld [vmem:[#allocation7 + $0x50] sm:$0xff]
    %v246 = vld [vmem:[#allocation7 + $0x58] sm:$0xff]
    %v247 = vld [vmem:[#allocation7 + $0x60] sm:$0xff]
    %v248 = vld [vmem:[#allocation7 + $0x68] sm:$0xff]
    %v249 = vld [vmem:[#allocation7 + $0x70] sm:$0xff]
    %v250 = vld [vmem:[#allocation7 + $0x78] sm:$0xff]
    %251 = vmatpush.msra.mxu0 %v250
    %252 = vmatpush.msra.mxu0 %v249
    %253 = vmatpush.msra.mxu0 %v248
    %254 = vmatpush.msra.mxu0 %v247
    %255 = vmatpush.msra.mxu0 %v246
    %256 = vmatpush.msra.mxu0 %v245
    %257 = vmatpush.msra.mxu0 %v244
    %258 = vmatpush.msra.mxu0 %v243
    %259 = vmatpush.msra.mxu0 %v242
    %260 = vmatpush.msra.mxu0 %v241
    %261 = vmatpush.msra.mxu0 %v240
    %262 = vmatpush.msra.mxu0 %v239
    %263 = vmatpush.msra.mxu0 %v238
    %264 = vmatpush.msra.mxu0 %v237
    %265 = vmatpush.msra.mxu0 %v236
    %266 = vmatpush.msra.mxu0 %v235
    %267 = vmatmul.f32.gmra.mxu0 %v233
    %v268 = vpop.f32.mrf.mxu0
    %v269 = vadd.f32 0.0, %v268
    %270 = vmatmul.f32.gmra.mxu0 %v234
    %v271 = vpop.f32.mrf.mxu0
    %v272 = vadd.f32 0.0, %v271
    %273 = vdwg.mxu0
    %v274 = vld [vmem:[%s5] sm:$0x1]
    %v275 = vld [vmem:[%s6] sm:$0x1]
    %276 = vadd.xlane.f32.xlu0 %v269
    %v277 = vpop.xlane.xlu0 %276
    %278 = vadd.xlane.f32.xlu0 %v272
    %v279 = vpop.xlane.xlu0 %278
    %v280 = vmul.f32 %v277, 0.03125
    %v281 = vmul.f32 %v279, 0.03125
    %v282 = vmul.f32 %v269, %v269
    %v283 = vmul.f32 %v272, %v272
    %284 = vadd.xlane.f32.xlu0 %v282
    %v285 = vpop.xlane.xlu0 %284
    %286 = vadd.xlane.f32.xlu0 %v283
    %v287 = vpop.xlane.xlu0 %286
    %v288 = vmul.f32 %v285, 0.03125
    %v289 = vmul.f32 %v287, 0.03125
    %v290 = vmul.f32 %v280, %v280
    %v291 = vmul.f32 %v281, %v281
    %v292 = vsub.f32 %v288, %v290
    %v293 = vsub.f32 %v289, %v291
    %v294 = vsub.f32 %v269, %v280
    %v295 = vsub.f32 %v272, %v281
    %v296 = vmax.f32 %v292, 0.0
    %v297 = vmax.f32 %v293, 0.0
    %v298 = vadd.f32 %v296, 0.001
    %v299 = vadd.f32 %v297, 0.001
    %v300 = vrsqrt.pop %v298
    %v301 = vmul.f32 %v300, %v298
    %v302 = vmul.f32 %v301, %v300
    %v303 = vmul.f32 0.5, %v302
    %v304 = vsub.f32 1.5, %v303
    %v305 = vmul.f32 %v300, %v304
    %vm306 = vweird.f32 %v298
    %vm307 = vweird.f32 %v300
    %vm308 = vmor %vm306, %vm307
    %v309 = vsel %vm308, %v300, %v305
    %v310 = vrsqrt.pop %v299
    %v311 = vmul.f32 %v310, %v299
    %v312 = vmul.f32 %v311, %v310
    %v313 = vmul.f32 0.5, %v312
    %v314 = vsub.f32 1.5, %v313
    %v315 = vmul.f32 %v310, %v314
    %vm316 = vweird.f32 %v299
    %vm317 = vweird.f32 %v310
    %vm318 = vmor %vm316, %vm317
    %v319 = vsel %vm318, %v310, %v315
    %v320 = vmul.f32 %v294, %v309
    %v321 = vmul.f32 %v295, %v319
    %v323 = vperm.slane %v274, 0
    %v325 = vmul.f32 %v320, %v323
    %v326 = vmul.f32 %v321, %v323
    %v328 = vperm.slane %v275, 0
    %v330 = vadd.f32 %v325, %v328
    %v331 = vadd.f32 %v326, %v328
    %v332 = vxor.u32 %v330, 2147483648
    %v333 = vxor.u32 %v331, 2147483648
    %v334 = vmul.f32 %v332, 1.442695
    %v335 = vpow.pop %v334
    %v336 = vmul.f32 %v333, 1.442695
    %v337 = vpow.pop %v336
    %v338 = vadd.f32 %v335, 1.0
    %v339 = vadd.f32 %v337, 1.0
    %v340 = vrcp.pop %v338
    %v341 = vmul.f32 %v338, %v340
    %v342 = vsub.f32 1.0, %v341
    %v343 = vmul.f32 %v340, %v342
    %v344 = vadd.f32 %v340, %v343
    %vm345 = vweird.f32 %v338
    %vm346 = vweird.f32 %v340
    %vm347 = vmor %vm345, %vm346
    %v348 = vsel %vm347, %v340, %v344
    %v349 = vand.u32 2147483647, %v338
    %vm350 = vcmp.eq.f32.partialorder %v349, 8.507059e+37
    %v351 = vand.u32 %v338, 2147483648
    %v352 = vor.u32 1.1754944e-38, %v351
    %v353 = vsel %vm350, %v352, %v348
    %v354 = vmul.f32 1.0, %v353
    %v355 = vrcp.pop %v339
    %v356 = vmul.f32 %v339, %v355
    %v357 = vsub.f32 1.0, %v356
    %v358 = vmul.f32 %v355, %v357
    %v359 = vadd.f32 %v355, %v358
    %vm360 = vweird.f32 %v339
    %vm361 = vweird.f32 %v355
    %vm362 = vmor %vm360, %vm361
    %v363 = vsel %vm362, %v355, %v359
    %v364 = vand.u32 2147483647, %v339
    %vm365 = vcmp.eq.f32.partialorder %v364, 8.507059e+37
    %v366 = vand.u32 %v339, 2147483648
    %v367 = vor.u32 1.1754944e-38, %v366
    %v368 = vsel %vm365, %v367, %v363
    %v369 = vmul.f32 1.0, %v368
    %v370 = vmul.f32 %v330, %v354
    %v371 = vmul.f32 %v331, %v369
    %v372 = vld [vmem:[#allocation8] sm:$0xff]
    %v373 = vld [vmem:[#allocation8 + $0x8] sm:$0xff]
    %v374 = vld [vmem:[#allocation8 + $0x10] sm:$0xff]
    %v375 = vld [vmem:[#allocation8 + $0x18] sm:$0xff]
    %v376 = vld [vmem:[#allocation8 + $0x20] sm:$0xff]
    %v377 = vld [vmem:[#allocation8 + $0x28] sm:$0xff]
    %v378 = vld [vmem:[#allocation8 + $0x30] sm:$0xff]
    %v379 = vld [vmem:[#allocation8 + $0x38] sm:$0xff]
    %v380 = vld [vmem:[#allocation8 + $0x40] sm:$0xff]
    %v381 = vld [vmem:[#allocation8 + $0x48] sm:$0xff]
    %v382 = vld [vmem:[#allocation8 + $0x50] sm:$0xff]
    %v383 = vld [vmem:[#allocation8 + $0x58] sm:$0xff]
    %v384 = vld [vmem:[#allocation8 + $0x60] sm:$0xff]
    %v385 = vld [vmem:[#allocation8 + $0x68] sm:$0xff]
    %v386 = vld [vmem:[#allocation8 + $0x70] sm:$0xff]
    %v387 = vld [vmem:[#allocation8 + $0x78] sm:$0xff]
    %v388 = vld [vmem:[%s8] sm:$0x1]
    %v390 = vperm.slane %v388, 0
    %392 = vmatpush.msra.mxu0 %v387
    %393 = vmatpush.msra.mxu0 %v386
    %394 = vmatpush.msra.mxu0 %v385
    %395 = vmatpush.msra.mxu0 %v384
    %396 = vmatpush.msra.mxu0 %v383
    %397 = vmatpush.msra.mxu0 %v382
    %398 = vmatpush.msra.mxu0 %v381
    %399 = vmatpush.msra.mxu0 %v380
    %400 = vmatpush.msra.mxu0 %v379
    %401 = vmatpush.msra.mxu0 %v378
    %402 = vmatpush.msra.mxu0 %v377
    %403 = vmatpush.msra.mxu0 %v376
    %404 = vmatpush.msra.mxu0 %v375
    %405 = vmatpush.msra.mxu0 %v374
    %406 = vmatpush.msra.mxu0 %v373
    %407 = vmatpush.msra.mxu0 %v372
    %408 = vmatmul.f32.gmra.mxu0 %v370
    %v409 = vpop.f32.mrf.mxu0
    %v410 = vadd.f32 %v390, %v409
    %411 = vmatmul.f32.gmra.mxu0 %v371
    %v412 = vpop.f32.mrf.mxu0
    %v413 = vadd.f32 %v390, %v412
    %414 = vdwg.mxu0
    %v415 = vtanh.pop %v410
    %v416 = vtanh.pop %v413
    %417 = vst [vmem:[#allocation10] sm:$0xff] %v415
    %418 = vst [vmem:[#allocation10 + $0x8] sm:$0xff] %v416
    // Predicated region
    $region54: #{tpu_custom_call.1} parent=1 // pred_check
      _
    $region55: #{tpu_custom_call.1} parent=1 // pred_check_branch
      %420 = sbr.rel (0) target = $region57
    $region56: #{tpu_custom_call.1} parent=1 // pred_region
      %422 = vsyncadd [#allocation4], 0
      %s423 = sshll.u32 [#allocation10], 4
      %s424 = int_to_ptr.vmem [resolvable:$true] %s423
      %s425 = sshll.u32 %s9, 4
      %s426 = int_to_ptr.hbm [resolvable:$true] %s425
      %431 = dma.vmem_to_hbm [thread:$0]  %s424, 256, %s426, [#allocation4], 128, 128, 8
    $region57: #{tpu_custom_call.1} parent=1 // pred_fallthru
      _
    // Predicated region
    $region58: #{tpu_custom_call.1} parent=1 // pred_check
      _
    $region59: #{tpu_custom_call.1} parent=1 // pred_check_branch
      %433 = sbr.rel (0) target = $region61
    $region60: #{tpu_custom_call.1} parent=1 // pred_region
      %435 = dma.done [#allocation4], 256
    $region61: #{tpu_custom_call.1} parent=1 // pred_fallthru
      _
    %436 = vsyncpa [#allocation3], 1
    %437 = vsyncpa [#allocation6], 1
    %438 = vsyncpa [#allocation9], 1
    %439 = vsyncpa [#allocation4], 1

</llo_original>
